<compile_context>
chip_gen: v7x
topology: tpu7x:2x2x1
jax: 0.10.0
libtpu: 0.0.40
codegen_flags: <defaults>
</compile_context>

<pallas_src>
import functools

import jax
import jax.numpy as jnp
from jax.experimental import pallas as pl
from jax.experimental.pallas import tpu as pltpu

LANE = 128
NSHARDS = 2  # leading "parallel" grid axis -> both TensorCores on v7x


def _masked_bce_kernel(dims_ref, x_ref, t_ref, loss_ref, mask_ref, *,
                       tm, steps_total, steps_per_shard):
    c = pl.program_id(0)   # shard (parallel)
    i = pl.program_id(1)   # row-tile step within shard (arbitrary / sequential)

    @pl.when(i == 0)
    def _init():
        loss_ref[...] = jnp.zeros_like(loss_ref)
        mask_ref[...] = jnp.zeros_like(mask_ref)

    blk = c * steps_per_shard + i          # global row-block index (unclamped)
    n_full_rows = dims_ref[0]              # number of fully-populated 128-lane rows
    rem_lanes = dims_ref[1]                # valid lanes in the one partial row

    def accumulate(contrib, mask):
        # Fold tm rows into the resident (8, 128) accumulators with pure VPU
        # adds (tile-aligned reshape; no cross-lane XLU reduce per step).
        loss_ref[...] += contrib.reshape(tm // 8, 8, LANE).sum(axis=0)
        mask_ref[...] += mask.reshape(tm // 8, 8, LANE).sum(axis=0)

    def bce_and_mask(x, t):
        mask = (t != -1.0).astype(jnp.float32)
        # Numerically stable BCEWithLogitsLoss (reduction='none'):
        #   loss = max(x, 0) - x*t + log(1 + exp(-|x|))
        bce = jnp.maximum(x, 0.0) - x * t + jnp.log(1.0 + jnp.exp(-jnp.abs(x)))
        return bce * mask, mask

    in_range = blk < steps_total                       # skip duplicated (clamped) blocks
    interior = jnp.logical_and(in_range, (blk + 1) * tm <= n_full_rows)

    # Fast path: whole block is inside the real data -> no iota, no wheres.
    @pl.when(interior)
    def _fast():
        x = x_ref[...].astype(jnp.float32)
        t = t_ref[...].astype(jnp.float32)
        contrib, mask = bce_and_mask(x, t)
        accumulate(contrib, mask)

    # Edge path (at most one block per call): mask out the tail / padded rows.
    @pl.when(jnp.logical_and(in_range, jnp.logical_not(interior)))
    def _edge():
        row0 = blk * tm
        rows = row0 + jax.lax.broadcasted_iota(jnp.int32, (tm, LANE), 0)
        lanes = jax.lax.broadcasted_iota(jnp.int32, (tm, LANE), 1)
        valid = jnp.logical_or(
            rows < n_full_rows,
            jnp.logical_and(rows == n_full_rows, lanes < rem_lanes))
        # Sanitize BOTH x and t: garbage NaN/Inf in t would otherwise survive as
        # 0 * NaN = NaN through bce * mask even though mask == 0 there.
        x = jnp.where(valid, x_ref[...].astype(jnp.float32), 0.0)
        t = jnp.where(valid, t_ref[...].astype(jnp.float32), -1.0)
        contrib, mask = bce_and_mask(x, t)
        accumulate(contrib, mask)


@functools.partial(jax.jit, static_argnames=("tm",))
def masked_bce_loss(inputs, targets, *, tm=4096):
    """Equivalent of MaskedBCELoss().forward(inputs, targets) -> scalar f32."""
    assert tm % 8 == 0 and tm >= 8
    x = inputs.reshape(-1)            # keep native dtype; cast happens in-kernel
    t = targets.reshape(-1)
    n = x.shape[0]

    # Only pad (a real copy) when the flat size is not a multiple of 128 lanes
    # or is smaller than one (8, 128) sublane tile; the pad is < 1024 elements
    # and its value is irrelevant (excluded by the in-kernel valid mask).
    n_padded = max(-(-n // LANE) * LANE, 8 * LANE)
    if n_padded != n:
        x = jnp.pad(x, (0, n_padded - n))
        t = jnp.pad(t, (0, n_padded - n))
    M = n_padded // LANE              # >= 8 by construction
    x2 = x.reshape(M, LANE)
    t2 = t.reshape(M, LANE)

    tm_eff = min(tm, (M // 8) * 8)    # multiple of 8, <= M (ragged last block is OK)
    steps_total = -(-M // tm_eff)
    steps_per_shard = -(-steps_total // NSHARDS)

    def data_map(c, i, dims):
        # Clamp so duplicated grid steps (when steps_total isn't a multiple of
        # NSHARDS) never DMA out of bounds; the kernel skips them entirely.
        return (jnp.minimum(c * steps_per_shard + i, steps_total - 1), 0)

    out_spec = pl.BlockSpec((8, LANE), lambda c, i, dims: (c, 0))
    dims = jnp.array([n // LANE, n % LANE], dtype=jnp.int32)

    loss_part, mask_part = pl.pallas_call(
        functools.partial(_masked_bce_kernel, tm=tm_eff,
                          steps_total=steps_total,
                          steps_per_shard=steps_per_shard),
        out_shape=(
            jax.ShapeDtypeStruct((NSHARDS * 8, LANE), jnp.float32),
            jax.ShapeDtypeStruct((NSHARDS * 8, LANE), jnp.float32),
        ),
        grid_spec=pltpu.PrefetchScalarGridSpec(
            num_scalar_prefetch=1,
            grid=(NSHARDS, steps_per_shard),
            in_specs=[
                pl.BlockSpec((tm_eff, LANE), data_map),
                pl.BlockSpec((tm_eff, LANE), data_map),
            ],
            out_specs=[out_spec, out_spec],
        ),
        compiler_params=pltpu.CompilerParams(
            dimension_semantics=("parallel", "arbitrary"),
            vmem_limit_bytes=32 * 1024 * 1024,   # safe on v5e; default on v6e/v7x
        ),
    )(dims, x2, t2)

    # Tiny final reduction + divide (NSHARDS*8*128 floats per output).
    return jnp.sum(loss_part) / (jnp.sum(mask_part) + 1e-8)


def _reference(inputs, targets):
    x = inputs.astype(jnp.float32)
    t = targets.astype(jnp.float32)
    mask = (t != -1.0).astype(jnp.float32)
    bce = jnp.maximum(x, 0.0) - x * t + jnp.log1p(jnp.exp(-jnp.abs(x)))
    return jnp.sum(bce * mask) / (jnp.sum(mask) + 1e-8)


if __name__ == "__main__":
    key = jax.random.PRNGKey(0)
    k1, k2, k3 = jax.random.split(key, 3)

    B, C, H, W = 2, 4, 16, 16  # NCHW, matching the PyTorch module's usage
    inputs = jax.random.normal(k1, (B, C, H, W), dtype=jnp.float32)
    # Targets in {0, 1}, with some entries set to -1 (ignored by the mask).
    targets = jax.random.bernoulli(k2, 0.5, (B, C, H, W)).astype(jnp.float32)
    ignore = jax.random.bernoulli(k3, 0.25, (B, C, H, W))
    targets = jnp.where(ignore, -1.0, targets)

    loss = jax.block_until_ready(masked_bce_loss(inputs, targets))
    ref = _reference(inputs, targets)
    assert jnp.allclose(loss, ref, rtol=1e-5, atol=1e-5), (loss, ref)

    # Ragged shape exercising the in-kernel tail masking (edge pl.when path).
    k4, k5, k6 = jax.random.split(k3, 3)
    inputs2 = jax.random.normal(k4, (2, 3, 5, 7), dtype=jnp.float32)
    targets2 = jax.random.bernoulli(k5, 0.5, (2, 3, 5, 7)).astype(jnp.float32)
    targets2 = jnp.where(jax.random.bernoulli(k6, 0.25, (2, 3, 5, 7)), -1.0, targets2)
    loss2 = jax.block_until_ready(masked_bce_loss(inputs2, targets2))
    ref2 = _reference(inputs2, targets2)
    assert jnp.allclose(loss2, ref2, rtol=1e-5, atol=1e-5), (loss2, ref2)

    print("KERNEL_OK")
</pallas_src>

<mosaic_0001>
module attributes {stable_mosaic.version = 11 : i64} {
  func.func @_masked_bce_kernel(%arg0: i32, %arg1: i32, %arg2: memref<2xi32, #tpu.memory_space<smem>>, %arg3: memref<16x128xf32, #tpu.memory_space<vmem>>, %arg4: memref<16x128xf32, #tpu.memory_space<vmem>>, %arg5: memref<8x128xf32, #tpu.memory_space<vmem>>, %arg6: memref<8x128xf32, #tpu.memory_space<vmem>>) attributes {dimension_semantics = [#tpu.dimension_semantics<parallel>, #tpu.dimension_semantics<arbitrary>], iteration_bounds = array<i64: 2, 1>, scalar_prefetch = 1 : i64, scratch_operands = 0 : i64, tpu.core_type = #tpu.core_type<tc>, window_params = [{transform_indices = @transform_0, window_bounds = array<i64: 16, 128>}, {transform_indices = @transform_1, window_bounds = array<i64: 16, 128>}, {transform_indices = @transform_2, window_bounds = array<i64: 8, 128>}, {transform_indices = @transform_3, window_bounds = array<i64: 8, 128>}]} {
    %c0_i32 = arith.constant 0 : i32
    %0 = arith.cmpi eq, %arg1, %c0_i32 : i32
    %1 = arith.extui %0 : i1 to i32
    %c0_i32_0 = arith.constant 0 : i32
    %2 = arith.cmpi ne, %1, %c0_i32_0 : i32
    scf.if %2 {
      %cst = arith.constant 0.000000e+00 : f32
      %18 = vector.broadcast %cst : f32 to vector<8x128xf32>
      %c0_5 = arith.constant 0 : index
      %c0_6 = arith.constant 0 : index
      %19 = vector.load %arg5[%c0_5, %c0_6] : memref<8x128xf32, #tpu.memory_space<vmem>>, vector<8x128xf32>
      tpu.vector_store %arg5[%c0_5, %c0_6], %18 {strides = array<i32>} : memref<8x128xf32, #tpu.memory_space<vmem>>, vector<8x128xf32>,
      %cst_7 = arith.constant 0.000000e+00 : f32
      %20 = vector.broadcast %cst_7 : f32 to vector<8x128xf32>
      %c0_8 = arith.constant 0 : index
      %c0_9 = arith.constant 0 : index
      %21 = vector.load %arg6[%c0_8, %c0_9] : memref<8x128xf32, #tpu.memory_space<vmem>>, vector<8x128xf32>
      tpu.vector_store %arg6[%c0_8, %c0_9], %20 {strides = array<i32>} : memref<8x128xf32, #tpu.memory_space<vmem>>, vector<8x128xf32>,
    } else {
    }
    %c1_i32 = arith.constant 1 : i32
    %3 = arith.muli %arg0, %c1_i32 : i32
    %4 = arith.addi %3, %arg1 : i32
    %c0 = arith.constant 0 : index
    %5 = memref.load %arg2[%c0] : memref<2xi32, #tpu.memory_space<smem>>
    %c1 = arith.constant 1 : index
    %6 = memref.load %arg2[%c1] : memref<2xi32, #tpu.memory_space<smem>>
    %c1_i32_1 = arith.constant 1 : i32
    %7 = arith.cmpi slt, %4, %c1_i32_1 : i32
    %c1_i32_2 = arith.constant 1 : i32
    %8 = arith.addi %4, %c1_i32_2 : i32
    %c16_i32 = arith.constant 16 : i32
    %9 = arith.muli %8, %c16_i32 : i32
    %10 = arith.cmpi sle, %9, %5 : i32
    %11 = arith.andi %7, %10 : i1
    %12 = arith.extui %11 : i1 to i32
    %c0_i32_3 = arith.constant 0 : i32
    %13 = arith.cmpi ne, %12, %c0_i32_3 : i32
    scf.if %13 {
      %c0_5 = arith.constant 0 : index
      %c0_6 = arith.constant 0 : index
      %18 = vector.load %arg3[%c0_5, %c0_6] : memref<16x128xf32, #tpu.memory_space<vmem>>, vector<16x128xf32>
      %c0_7 = arith.constant 0 : index
      %c0_8 = arith.constant 0 : index
      %19 = vector.load %arg4[%c0_7, %c0_8] : memref<16x128xf32, #tpu.memory_space<vmem>>, vector<16x128xf32>
      %cst = arith.constant -1.000000e+00 : f32
      %20 = vector.broadcast %cst : f32 to vector<16x128xf32>
      %21 = arith.cmpf one, %19, %20 : vector<16x128xf32>
      %22 = arith.extui %21 : vector<16x128xi1> to vector<16x128xi32>
      %23 = arith.sitofp %22 : vector<16x128xi32> to vector<16x128xf32>
      %cst_9 = arith.constant 0.000000e+00 : f32
      %24 = vector.broadcast %cst_9 : f32 to vector<16x128xf32>
      %25 = arith.maximumf %18, %24 : vector<16x128xf32>
      %26 = arith.mulf %18, %19 : vector<16x128xf32>
      %27 = arith.subf %25, %26 : vector<16x128xf32>
      %28 = math.absf %18 : vector<16x128xf32>
      %cst_10 = arith.constant 0.000000e+00 : f32
      %29 = vector.broadcast %cst_10 : f32 to vector<16x128xf32>
      %30 = arith.subf %29, %28 : vector<16x128xf32>
      %31 = math.exp %30 : vector<16x128xf32>
      %cst_11 = arith.constant 1.000000e+00 : f32
      %32 = vector.broadcast %cst_11 : f32 to vector<16x128xf32>
      %33 = arith.addf %32, %31 : vector<16x128xf32>
      %34 = math.log %33 : vector<16x128xf32>
      %35 = arith.addf %27, %34 : vector<16x128xf32>
      %36 = arith.mulf %35, %23 : vector<16x128xf32>
      %c0_12 = arith.constant 0 : index
      %c0_13 = arith.constant 0 : index
      %37 = vector.load %arg5[%c0_12, %c0_13] : memref<8x128xf32, #tpu.memory_space<vmem>>, vector<8x128xf32>
      %38 = vector.shape_cast %36 : vector<16x128xf32> to vector<2x8x128xf32>
      %cst_14 = arith.constant dense<0.000000e+00> : vector<8x128xf32>
      %39 = vector.multi_reduction <add>, %38, %cst_14 [0] : vector<2x8x128xf32> to vector<8x128xf32>
      %40 = arith.addf %37, %39 : vector<8x128xf32>
      %c0_15 = arith.constant 0 : index
      %c0_16 = arith.constant 0 : index
      %41 = vector.load %arg5[%c0_15, %c0_16] : memref<8x128xf32, #tpu.memory_space<vmem>>, vector<8x128xf32>
      tpu.vector_store %arg5[%c0_15, %c0_16], %40 {strides = array<i32>} : memref<8x128xf32, #tpu.memory_space<vmem>>, vector<8x128xf32>,
      %c0_17 = arith.constant 0 : index
      %c0_18 = arith.constant 0 : index
      %42 = vector.load %arg6[%c0_17, %c0_18] : memref<8x128xf32, #tpu.memory_space<vmem>>, vector<8x128xf32>
      %43 = vector.shape_cast %23 : vector<16x128xf32> to vector<2x8x128xf32>
      %cst_19 = arith.constant dense<0.000000e+00> : vector<8x128xf32>
      %44 = vector.multi_reduction <add>, %43, %cst_19 [0] : vector<2x8x128xf32> to vector<8x128xf32>
      %45 = arith.addf %42, %44 : vector<8x128xf32>
      %c0_20 = arith.constant 0 : index
      %c0_21 = arith.constant 0 : index
      %46 = vector.load %arg6[%c0_20, %c0_21] : memref<8x128xf32, #tpu.memory_space<vmem>>, vector<8x128xf32>
      tpu.vector_store %arg6[%c0_20, %c0_21], %45 {strides = array<i32>} : memref<8x128xf32, #tpu.memory_space<vmem>>, vector<8x128xf32>,
    } else {
    }
    %true = arith.constant true
    %14 = arith.xori %11, %true : i1
    %15 = arith.andi %7, %14 : i1
    %16 = arith.extui %15 : i1 to i32
    %c0_i32_4 = arith.constant 0 : i32
    %17 = arith.cmpi ne, %16, %c0_i32_4 : i32
    scf.if %17 {
      %c16_i32_5 = arith.constant 16 : i32
      %18 = arith.muli %4, %c16_i32_5 : i32
      %19 = tpu.iota {dimensions = array<i32: 0>} : vector<16x128xi32>
      %20 = vector.broadcast %18 : i32 to vector<16x128xi32>
      %21 = arith.addi %20, %19 : vector<16x128xi32>
      %22 = tpu.iota {dimensions = array<i32: 1>} : vector<16x128xi32>
      %23 = vector.broadcast %5 : i32 to vector<16x128xi32>
      %24 = arith.cmpi slt, %21, %23 : vector<16x128xi32>
      %25 = vector.broadcast %5 : i32 to vector<16x128xi32>
      %26 = arith.cmpi eq, %21, %25 : vector<16x128xi32>
      %27 = vector.broadcast %6 : i32 to vector<16x128xi32>
      %28 = arith.cmpi slt, %22, %27 : vector<16x128xi32>
      %29 = arith.andi %26, %28 : vector<16x128xi1>
      %30 = arith.ori %24, %29 : vector<16x128xi1>
      %c0_6 = arith.constant 0 : index
      %c0_7 = arith.constant 0 : index
      %31 = vector.load %arg3[%c0_6, %c0_7] : memref<16x128xf32, #tpu.memory_space<vmem>>, vector<16x128xf32>
      %cst = arith.constant 0.000000e+00 : f32
      %32 = vector.broadcast %cst : f32 to vector<16x128xf32>
      %33 = arith.select %30, %31, %32 : vector<16x128xi1>, vector<16x128xf32>
      %c0_8 = arith.constant 0 : index
      %c0_9 = arith.constant 0 : index
      %34 = vector.load %arg4[%c0_8, %c0_9] : memref<16x128xf32, #tpu.memory_space<vmem>>, vector<16x128xf32>
      %cst_10 = arith.constant -1.000000e+00 : f32
      %35 = vector.broadcast %cst_10 : f32 to vector<16x128xf32>
      %36 = arith.select %30, %34, %35 : vector<16x128xi1>, vector<16x128xf32>
      %cst_11 = arith.constant -1.000000e+00 : f32
      %37 = vector.broadcast %cst_11 : f32 to vector<16x128xf32>
      %38 = arith.cmpf one, %36, %37 : vector<16x128xf32>
      %39 = arith.extui %38 : vector<16x128xi1> to vector<16x128xi32>
      %40 = arith.sitofp %39 : vector<16x128xi32> to vector<16x128xf32>
      %cst_12 = arith.constant 0.000000e+00 : f32
      %41 = vector.broadcast %cst_12 : f32 to vector<16x128xf32>
      %42 = arith.maximumf %33, %41 : vector<16x128xf32>
      %43 = arith.mulf %33, %36 : vector<16x128xf32>
      %44 = arith.subf %42, %43 : vector<16x128xf32>
      %45 = math.absf %33 : vector<16x128xf32>
      %cst_13 = arith.constant 0.000000e+00 : f32
      %46 = vector.broadcast %cst_13 : f32 to vector<16x128xf32>
      %47 = arith.subf %46, %45 : vector<16x128xf32>
      %48 = math.exp %47 : vector<16x128xf32>
      %cst_14 = arith.constant 1.000000e+00 : f32
      %49 = vector.broadcast %cst_14 : f32 to vector<16x128xf32>
      %50 = arith.addf %49, %48 : vector<16x128xf32>
      %51 = math.log %50 : vector<16x128xf32>
      %52 = arith.addf %44, %51 : vector<16x128xf32>
      %53 = arith.mulf %52, %40 : vector<16x128xf32>
      %c0_15 = arith.constant 0 : index
      %c0_16 = arith.constant 0 : index
      %54 = vector.load %arg5[%c0_15, %c0_16] : memref<8x128xf32, #tpu.memory_space<vmem>>, vector<8x128xf32>
      %55 = vector.shape_cast %53 : vector<16x128xf32> to vector<2x8x128xf32>
      %cst_17 = arith.constant dense<0.000000e+00> : vector<8x128xf32>
      %56 = vector.multi_reduction <add>, %55, %cst_17 [0] : vector<2x8x128xf32> to vector<8x128xf32>
      %57 = arith.addf %54, %56 : vector<8x128xf32>
      %c0_18 = arith.constant 0 : index
      %c0_19 = arith.constant 0 : index
      %58 = vector.load %arg5[%c0_18, %c0_19] : memref<8x128xf32, #tpu.memory_space<vmem>>, vector<8x128xf32>
      tpu.vector_store %arg5[%c0_18, %c0_19], %57 {strides = array<i32>} : memref<8x128xf32, #tpu.memory_space<vmem>>, vector<8x128xf32>,
      %c0_20 = arith.constant 0 : index
      %c0_21 = arith.constant 0 : index
      %59 = vector.load %arg6[%c0_20, %c0_21] : memref<8x128xf32, #tpu.memory_space<vmem>>, vector<8x128xf32>
      %60 = vector.shape_cast %40 : vector<16x128xf32> to vector<2x8x128xf32>
      %cst_22 = arith.constant dense<0.000000e+00> : vector<8x128xf32>
      %61 = vector.multi_reduction <add>, %60, %cst_22 [0] : vector<2x8x128xf32> to vector<8x128xf32>
      %62 = arith.addf %59, %61 : vector<8x128xf32>
      %c0_23 = arith.constant 0 : index
      %c0_24 = arith.constant 0 : index
      %63 = vector.load %arg6[%c0_23, %c0_24] : memref<8x128xf32, #tpu.memory_space<vmem>>, vector<8x128xf32>
      tpu.vector_store %arg6[%c0_23, %c0_24], %62 {strides = array<i32>} : memref<8x128xf32, #tpu.memory_space<vmem>>, vector<8x128xf32>,
    } else {
    }
    return
  }
  func.func @transform_0(%arg0: i32, %arg1: i32, %arg2: memref<2xi32, #tpu.memory_space<smem>>) -> (i32, i32) {
    %c1_i32 = arith.constant 1 : i32
    %0 = arith.muli %arg0, %c1_i32 : i32
    %1 = arith.addi %0, %arg1 : i32
    %c0_i32 = arith.constant 0 : i32
    %2 = arith.minsi %1, %c0_i32 : i32
    %c0_i32_0 = arith.constant 0 : i32
    %c0_i32_1 = arith.constant 0 : i32
    return %2, %c0_i32_0 : i32, i32
  }
  func.func @transform_1(%arg0: i32, %arg1: i32, %arg2: memref<2xi32, #tpu.memory_space<smem>>) -> (i32, i32) {
    %c1_i32 = arith.constant 1 : i32
    %0 = arith.muli %arg0, %c1_i32 : i32
    %1 = arith.addi %0, %arg1 : i32
    %c0_i32 = arith.constant 0 : i32
    %2 = arith.minsi %1, %c0_i32 : i32
    %c0_i32_0 = arith.constant 0 : i32
    %c0_i32_1 = arith.constant 0 : i32
    return %2, %c0_i32_0 : i32, i32
  }
  func.func @transform_2(%arg0: i32, %arg1: i32, %arg2: memref<2xi32, #tpu.memory_space<smem>>) -> (i32, i32) {
    %c0_i32 = arith.constant 0 : i32
    %c0_i32_0 = arith.constant 0 : i32
    return %arg0, %c0_i32 : i32, i32
  }
  func.func @transform_3(%arg0: i32, %arg1: i32, %arg2: memref<2xi32, #tpu.memory_space<smem>>) -> (i32, i32) {
    %c0_i32 = arith.constant 0 : i32
    %c0_i32_0 = arith.constant 0 : i32
    return %arg0, %c0_i32 : i32, i32
  }
}

</mosaic_0001>

<llo_original>
// kernel: masked_bce_loss.1
$region0: #{masked_bce_loss.1}
  #allocation0 [shape = 'u32[]', space=smem, size = 0x4, offset = 0x4, fixed_abs, tag = 'smem constant byte address 0x4 - core index']
  #allocation1 [shape = 'u32[144,128]{1,0:T(1,128)}', space=vmem, size = 0x12000, scoped, tag = 'internal scratch']
  #allocation2 [shape = 's32[1]{0}', space=sflag, size = 0x4, scoped, tag = 'scoped memory for masked_bce_loss.1']
  #allocation3 [shape = 'u8[512]{0}', space=smem, size = 0x200, scoped, tag = 'prefetched SMEM operand 0']
  %s0 = inlined_call_operand.vmem [shape: s32[2], index: 0, kind: input, shape index: {}]
  %s1 = inlined_call_operand.vmem [shape: f32[16,128], index: 1, kind: input, shape index: {}]
  %s2 = inlined_call_operand.vmem [shape: f32[16,128], index: 2, kind: input, shape index: {}]
  %s3 = inlined_call_operand.vmem [shape: f32[16,128], index: 3, kind: output, shape index: {0}]
  %s4 = inlined_call_operand.vmem [shape: f32[16,128], index: 4, kind: output, shape index: {1}]
  %5 = xla_tuple %s3, %s4
  %s6 = sld [smem:[#allocation0]]
  $region61: #{masked_bce_loss.1} parent=0
    _
  %s8 = ssub.s32 1, %s6
  %s9 = scalar_select 0, %s8, %s6
  %s10 = sshll.u32 %s0, 4
  %s11 = int_to_ptr.vmem [resolvable:$true] %s10
  %13 = dma.vmem_to_smem %s11, 16, [#allocation3], [#allocation2]
  %14 = dma.done [#allocation2], 16
  %15 = sfence
  loop: start=0, step=1, limit=4
  $region2: #{masked_bce_loss.1} parent=0 // loop_pre_header
    _
  $region3: #{masked_bce_loss.1} parent=0 // loop_header
    %s17 = sphi 0, %s21
    %p18 = scmp.ge.s32.totalorder %s17, 4
    %s24 = sphi 0, %s36
    %s25 = sphi 0, %s32
    %s26 = sphi 0, %s24
    %s27 = sphi 0, %s25
    %s28 = sphi 0, %s26
    %s29 = sphi 0, %s27
    %s45 = sphi 0, %s47
    %s48 = sphi 0, %s45
    %s49 = sphi 0, %s48
    %s65 = sphi 0, %s49
    %s77 = sphi 0, %s79
    %s80 = sphi 0, %s77
    %s81 = sphi 0, %s80
    %s97 = sphi 0, %s81
    %s103 = sphi 0, %s105
    %s106 = sphi 0, %s103
    %s107 = sphi 0, %s106
    %s123 = sphi 0, %s107
    %s129 = sphi 0, %s131
    %s132 = sphi 0, %s129
    %s133 = sphi 0, %s132
    %s149 = sphi 0, %s133
  $region4: #{masked_bce_loss.1} parent=0 // loop_header_branch
    %20 = sbr.rel (%p18) target = $region8
  $region5: #{masked_bce_loss.1} parent=0 // loop_body
    %s22 = ssub.s32 %s17, 1
    %s23 = ssub.s32 %s17, 2
    %s30 = sadd.s32 1, %s25
    %p31 = scmp.ge.s32.totalorder %s30, 1
    %s32 = scalar_select %p31, 0, %s30
    %s33 = sadd.s32 1, %s24
    %s34 = scalar_select %p31, %s33, %s24
    %p35 = scmp.ge.s32.totalorder %s34, 2
    %s36 = scalar_select %p35, 0, %s34
    %s37 = sadd.s32 %s24, %s25
    %p38 = scmp.lt.s32.totalorder %s37, 0
    %s39 = scalar_select %p38, %s37, 0
    %s40 = sadd.s32 %s36, %s32
    %p41 = scmp.lt.s32.totalorder %s40, 0
    %s42 = scalar_select %p41, %s40, 0
    %s43 = ssub.s32 %s39, %s42
    %p44 = scmp.eq.s32.totalorder %s43, 0
    %s46 = sadd.s32 %s45, 1
    %s47 = scalar_select %p44, %s45, %s46
    %p50 = pneg %p44
    %p51 = scmp.eq.s32.totalorder %s17, 1
    %p52 = por %p50, %p51
    %p53 = scmp.ne.s32.totalorder %s45, %s48
    %p54 = scmp.eq.s32.totalorder %s17, 0
    %p55 = por %p53, %p54
    %p56 = scmp.ne.s32.totalorder %s45, %s48
    %p57 = scmp.eq.s32.totalorder %s22, 1
    %p58 = por %p56, %p57
    %p59 = scmp.ne.s32.totalorder %s48, %s49
    %p60 = scmp.eq.s32.totalorder %s22, 0
    %p61 = por %p59, %p60
    %p62 = scmp.ne.s32.totalorder %s48, %s49
    %p63 = scmp.eq.s32.totalorder %s23, 1
    %p64 = por %p62, %p63
    %p66 = scmp.ne.s32.totalorder %s49, %s65
    %p67 = scmp.eq.s32.totalorder %s23, 0
    %p68 = por %p66, %p67
    %s69 = sadd.s32 %s24, %s25
    %p70 = scmp.lt.s32.totalorder %s69, 0
    %s71 = scalar_select %p70, %s69, 0
    %s72 = sadd.s32 %s36, %s32
    %p73 = scmp.lt.s32.totalorder %s72, 0
    %s74 = scalar_select %p73, %s72, 0
    %s75 = ssub.s32 %s71, %s74
    %p76 = scmp.eq.s32.totalorder %s75, 0
    %s78 = sadd.s32 %s77, 1
    %s79 = scalar_select %p76, %s77, %s78
    %p82 = pneg %p76
    %p83 = scmp.eq.s32.totalorder %s17, 1
    %p84 = por %p82, %p83
    %p85 = scmp.ne.s32.totalorder %s77, %s80
    %p86 = scmp.eq.s32.totalorder %s17, 0
    %p87 = por %p85, %p86
    %p88 = scmp.ne.s32.totalorder %s77, %s80
    %p89 = scmp.eq.s32.totalorder %s22, 1
    %p90 = por %p88, %p89
    %p91 = scmp.ne.s32.totalorder %s80, %s81
    %p92 = scmp.eq.s32.totalorder %s22, 0
    %p93 = por %p91, %p92
    %p94 = scmp.ne.s32.totalorder %s80, %s81
    %p95 = scmp.eq.s32.totalorder %s23, 1
    %p96 = por %p94, %p95
    %p98 = scmp.ne.s32.totalorder %s81, %s97
    %p99 = scmp.eq.s32.totalorder %s23, 0
    %p100 = por %p98, %p99
    %s101 = ssub.s32 %s24, %s36
    %p102 = scmp.eq.s32.totalorder %s101, 0
    %s104 = sadd.s32 %s103, 1
    %s105 = scalar_select %p102, %s103, %s104
    %p108 = pneg %p102
    %p109 = scmp.eq.s32.totalorder %s17, 1
    %p110 = por %p108, %p109
    %p111 = scmp.ne.s32.totalorder %s103, %s106
    %p112 = scmp.eq.s32.totalorder %s17, 0
    %p113 = por %p111, %p112
    %p114 = scmp.ne.s32.totalorder %s103, %s106
    %p115 = scmp.eq.s32.totalorder %s22, 1
    %p116 = por %p114, %p115
    %p117 = scmp.ne.s32.totalorder %s106, %s107
    %p118 = scmp.eq.s32.totalorder %s22, 0
    %p119 = por %p117, %p118
    %p120 = scmp.ne.s32.totalorder %s106, %s107
    %p121 = scmp.eq.s32.totalorder %s23, 1
    %p122 = por %p120, %p121
    %p124 = scmp.ne.s32.totalorder %s107, %s123
    %p125 = scmp.eq.s32.totalorder %s23, 0
    %p126 = por %p124, %p125
    %s127 = ssub.s32 %s24, %s36
    %p128 = scmp.eq.s32.totalorder %s127, 0
    %s130 = sadd.s32 %s129, 1
    %s131 = scalar_select %p128, %s129, %s130
    %p134 = pneg %p128
    %p135 = scmp.eq.s32.totalorder %s17, 1
    %p136 = por %p134, %p135
    %p137 = scmp.ne.s32.totalorder %s129, %s132
    %p138 = scmp.eq.s32.totalorder %s17, 0
    %p139 = por %p137, %p138
    %p140 = scmp.ne.s32.totalorder %s129, %s132
    %p141 = scmp.eq.s32.totalorder %s22, 1
    %p142 = por %p140, %p141
    %p143 = scmp.ne.s32.totalorder %s132, %s133
    %p144 = scmp.eq.s32.totalorder %s22, 0
    %p145 = por %p143, %p144
    %p146 = scmp.ne.s32.totalorder %s132, %s133
    %p147 = scmp.eq.s32.totalorder %s23, 1
    %p148 = por %p146, %p147
    %p150 = scmp.ne.s32.totalorder %s133, %s149
    %p151 = scmp.eq.s32.totalorder %s23, 0
    %p152 = por %p150, %p151
    %p153 = scmp.le.s32.totalorder 1, %s17
    %p154 = scmp.lt.s32.totalorder %s17, 3
    %p155 = pnand %p153, %p154
    %p156 = pneg %p155
    // Predicated region
    $region9: #{masked_bce_loss.1} parent=5 // pred_check
      _
    $region10: #{masked_bce_loss.1} parent=5 // pred_check_branch
      %158 = sbr.rel (%p155) target = $region12
    $region11: #{masked_bce_loss.1} parent=5 // pred_region
      %s159 = ssub.s32 %s17, 1
    $region12: #{masked_bce_loss.1} parent=5 // pred_fallthru
      _
    %p160 = scmp.lt.s32.totalorder %s17, 2
    // Predicated region
    $region13: #{masked_bce_loss.1} parent=5 // pred_check
      %p161 = pneg %p160
    $region14: #{masked_bce_loss.1} parent=5 // pred_check_branch
      %163 = sbr.rel (%p161) target = $region16
    $region15: #{masked_bce_loss.1} parent=5 // pred_region
      // Predicated region
      $region17: #{masked_bce_loss.1} parent=15 // pred_check
        %p164 = pneg %p55
      $region18: #{masked_bce_loss.1} parent=15 // pred_check_branch
        %166 = sbr.rel (%p164) target = $region20
      $region19: #{masked_bce_loss.1} parent=15 // pred_region
        %s167 = sadd.s32 %s24, %s25
        %p168 = scmp.lt.s32.totalorder %s167, 0
        %s169 = scalar_select %p168, %s167, 0
        %s170 = smul.u32 2, %s169
        %p171 = scmp.lt.s32.totalorder %s170, 1
        %s172 = scalar_select %p171, %s170, 1
        %s173 = smul.addr %s172, 8
        %s174 = scalar_lea.vmem %s1, %s173
        %s175 = sadd.s32 %s24, %s25
        %p176 = scmp.lt.s32.totalorder %s175, 0
        %s177 = scalar_select %p176, %s175, 0
        %s178 = smul.u32 2, %s177
      $region20: #{masked_bce_loss.1} parent=15 // pred_fallthru
        _
      // Predicated region
      $region21: #{masked_bce_loss.1} parent=15 // pred_check
        %p179 = pneg %p87
      $region22: #{masked_bce_loss.1} parent=15 // pred_check_branch
        %181 = sbr.rel (%p179) target = $region24
      $region23: #{masked_bce_loss.1} parent=15 // pred_region
        %s182 = sadd.s32 %s24, %s25
        %p183 = scmp.lt.s32.totalorder %s182, 0
        %s184 = scalar_select %p183, %s182, 0
        %s185 = smul.u32 2, %s184
        %p186 = scmp.lt.s32.totalorder %s185, 1
        %s187 = scalar_select %p186, %s185, 1
        %s188 = smul.addr %s187, 8
        %s189 = scalar_lea.vmem %s2, %s188
        %s190 = sadd.s32 %s24, %s25
        %p191 = scmp.lt.s32.totalorder %s190, 0
        %s192 = scalar_select %p191, %s190, 0
        %s193 = smul.u32 2, %s192
      $region24: #{masked_bce_loss.1} parent=15 // pred_fallthru
        _
    $region16: #{masked_bce_loss.1} parent=5 // pred_fallthru
      _
    %p194 = scmp.le.s32.totalorder 1, %s17
    %p195 = scmp.lt.s32.totalorder %s17, 3
    %p196 = pnand %p194, %p195
    %p197 = pneg %p196
    // Predicated region
    $region25: #{masked_bce_loss.1} parent=5 // pred_check
      _
    $region26: #{masked_bce_loss.1} parent=5 // pred_check_branch
      %199 = sbr.rel (%p196) target = $region28
    $region27: #{masked_bce_loss.1} parent=5 // pred_region
      %s200 = ssub.s32 %s17, 1
      %s201 = sadd.s32 %s26, %s27
      %p202 = scmp.lt.s32.totalorder %s201, 0
      %s203 = scalar_select %p202, %s201, 0
      %s204 = smul.u32 2, %s203
      %p205 = scmp.lt.s32.totalorder %s204, 1
      %s206 = scalar_select %p205, %s204, 1
      %s207 = smul.addr %s206, 8
      %s208 = scalar_lea.vmem %s1, %s207
      %p209 = pneg %p61
      %p210 = pneg %p58
      %s211 = sadd.s32 %s26, %s27
      %p212 = scmp.lt.s32.totalorder %s211, 0
      %s213 = scalar_select %p212, %s211, 0
      %s214 = smul.u32 2, %s213
      %p215 = scmp.lt.s32.totalorder %s214, 1
      %s216 = scalar_select %p215, %s214, 1
      %s217 = smul.addr %s216, 8
      %s218 = scalar_lea.vmem %s2, %s217
      %p219 = pneg %p93
      %p220 = pneg %p90
      %p221 = pneg %p119
      %p222 = pneg %p116
      %p223 = scmp.lt.s32.totalorder %s26, 1
      %s224 = scalar_select %p223, %s26, 1
      %s225 = smul.addr %s224, 8
      %s226 = scalar_lea.vmem %s3, %s225
      %p227 = pneg %p145
      %p228 = pneg %p142
      %p229 = scmp.lt.s32.totalorder %s26, 1
      %s230 = scalar_select %p229, %s26, 1
      %s231 = smul.addr %s230, 8
      %s232 = scalar_lea.vmem %s4, %s231
      %s233 = sadd.s32 %s26, %s27
      %p234 = scmp.lt.s32.totalorder %s233, 0
      %s235 = scalar_select %p234, %s233, 0
      %s236 = smul.u32 2, %s235
      %p237 = scmp.lt.s32.totalorder %s236, 1
      %s238 = scalar_select %p237, %s236, 1
      %s239 = smul.addr %s238, 8
      %s240 = scalar_lea.vmem %s1, %s239
      %s241 = sadd.s32 %s26, %s27
      %p242 = scmp.lt.s32.totalorder %s241, 0
      %s243 = scalar_select %p242, %s241, 0
      %s244 = smul.u32 2, %s243
      %s245 = sadd.s32 %s26, %s27
      %p246 = scmp.lt.s32.totalorder %s245, 0
      %s247 = scalar_select %p246, %s245, 0
      %s248 = smul.u32 2, %s247
      %p249 = scmp.lt.s32.totalorder %s248, 1
      %s250 = scalar_select %p249, %s248, 1
      %s251 = smul.addr %s250, 8
      %s252 = scalar_lea.vmem %s2, %s251
      %s253 = sadd.s32 %s26, %s27
      %p254 = scmp.lt.s32.totalorder %s253, 0
      %s255 = scalar_select %p254, %s253, 0
      %s256 = smul.u32 2, %s255
      %p257 = scmp.lt.s32.totalorder %s26, 1
      %s258 = scalar_select %p257, %s26, 1
      %s259 = smul.addr %s258, 8
      %s260 = scalar_lea.vmem %s3, %s259
      %p261 = scmp.lt.s32.totalorder %s26, 1
      %s262 = scalar_select %p261, %s26, 1
      %s263 = smul.addr %s262, 8
      %s264 = scalar_lea.vmem %s4, %s263
      %p265 = scmp.eq.s32.totalorder %s27, 0
      // Predicated region
      $region29: #{masked_bce_loss.1} parent=27 // pred_check
        %p266 = pneg %p265
      $region30: #{masked_bce_loss.1} parent=27 // pred_check_branch
        %268 = sbr.rel (%p266) target = $region32
      $region31: #{masked_bce_loss.1} parent=27 // pred_region
        %269 = vst [vmem:[%s260] sm:$0xff] 0.0
        %270 = vst [vmem:[%s264] sm:$0xff] 0.0
      $region32: #{masked_bce_loss.1} parent=27 // pred_fallthru
        _
      %s271 = sadd.s32 %s26, %s27
      %s272 = sld [smem:[#allocation3]]
      %s273 = sld [smem:[#allocation3 + $0x1]]
      %p274 = scmp.lt.s32.totalorder %s271, 1
      %s275 = sadd.s32 %s271, 1
      %s276 = smul.u32 %s275, 16
      %p277 = scmp.le.s32.totalorder %s276, %s272
      %p278 = pnand %p274, %p277
      %p279 = pneg %p278
      // Predicated region
      $region33: #{masked_bce_loss.1} parent=27 // pred_check
        _
      $region34: #{masked_bce_loss.1} parent=27 // pred_check_branch
        %281 = sbr.rel (%p278) target = $region36
      $region35: #{masked_bce_loss.1} parent=27 // pred_region
        %v282 = vld [vmem:[%s240] sm:$0xff]
        %v283 = vld [vmem:[%s240 + $0x8] sm:$0xff]
        %v284 = vld [vmem:[%s252] sm:$0xff]
        %v285 = vld [vmem:[%s252 + $0x8] sm:$0xff]
        %vm286 = vcmp.ne.f32.partialorder %v284, -1.0
        %vm287 = vcmp.ne.f32.partialorder %v285, -1.0
        %v288 = vsel %vm286, 1, 0
        %v289 = vsel %vm287, 1, 0
        %v290 = vcvt.s32.f32 %v288
        %v291 = vcvt.s32.f32 %v289
        %v292 = vmax.f32 %v282, 0.0
        %v293 = vmax.f32 %v283, 0.0
        %v294 = vmul.f32 %v282, %v284
        %v295 = vmul.f32 %v283, %v285
        %v296 = vsub.f32 %v292, %v294
        %v297 = vsub.f32 %v293, %v295
        %v298 = vand.u32 2147483647, %v282
        %v299 = vand.u32 2147483647, %v283
        %v300 = vsub.f32 0.0, %v298
        %v301 = vsub.f32 0.0, %v299
        %v302 = vmul.f32 %v300, 1.442695
        %v303 = vpow.pop %v302
        %v304 = vmul.f32 %v301, 1.442695
        %v305 = vpow.pop %v304
        %v306 = vadd.f32 %v303, 1.0
        %v307 = vadd.f32 %v305, 1.0
        %v308 = vlog2.pop %v306
        %v309 = vmul.f32 %v308, 0.6931472
        %v310 = vlog2.pop %v307
        %v311 = vmul.f32 %v310, 0.6931472
        %v312 = vadd.f32 %v296, %v309
        %v313 = vadd.f32 %v297, %v311
        %v314 = vmul.f32 %v312, %v290
        %v315 = vmul.f32 %v313, %v291
        %v316 = vld [vmem:[%s260] sm:$0xff]
        %v317 = vadd.f32 %v314, %v315
        %v318 = vadd.f32 %v316, %v317
        %319 = vst [vmem:[%s260] sm:$0xff] %v318
        %v320 = vld [vmem:[%s264] sm:$0xff]
        %v321 = vadd.f32 %v290, %v291
        %v322 = vadd.f32 %v320, %v321
        %323 = vst [vmem:[%s264] sm:$0xff] %v322
      $region36: #{masked_bce_loss.1} parent=27 // pred_fallthru
        _
      %p324 = pneg %p279
      %p325 = pnand %p274, %p324
      %p326 = pneg %p325
      // Predicated region
      $region37: #{masked_bce_loss.1} parent=27 // pred_check
        _
      $region38: #{masked_bce_loss.1} parent=27 // pred_check_branch
        %328 = sbr.rel (%p325) target = $region40
      $region39: #{masked_bce_loss.1} parent=27 // pred_region
        %s329 = smul.u32 %s271, 16
        %v330 = vlaneseq
        %v331 = vshrl.u32 %v330, 7
        %v332 = vadd.s32 %v331, 8
        %v333 = vstv %s329
        %v334 = vadd.s32 %v333, %v331
        %v335 = vadd.s32 %v333, %v332
        %v336 = vlaneseq
        %v337 = vand.u32 %v336, 127
        %v338 = vstv %s272
        %vm339 = vcmp.lt.s32.totalorder %v334, %v338
        %vm340 = vcmp.lt.s32.totalorder %v335, %v338
        %vm341 = vcmp.eq.s32.totalorder %v334, %v338
        %vm342 = vcmp.eq.s32.totalorder %v335, %v338
        %v343 = vstv %s273
        %vm344 = vcmp.lt.s32.totalorder %v337, %v343
        %vm345 = vmand %vm341, %vm344
        %vm346 = vmand %vm342, %vm344
        %vm347 = vmor %vm339, %vm345
        %vm348 = vmor %vm340, %vm346
        %v349 = vld [vmem:[%s240] sm:$0xff]
        %v350 = vld [vmem:[%s240 + $0x8] sm:$0xff]
        %v351 = vsel %vm347, %v349, 0.0
        %v352 = vsel %vm348, %v350, 0.0
        %v353 = vld [vmem:[%s252] sm:$0xff]
        %v354 = vld [vmem:[%s252 + $0x8] sm:$0xff]
        %v355 = vsel %vm347, %v353, -1.0
        %v356 = vsel %vm348, %v354, -1.0
        %vm357 = vcmp.ne.f32.partialorder %v355, -1.0
        %vm358 = vcmp.ne.f32.partialorder %v356, -1.0
        %v359 = vsel %vm357, 1, 0
        %v360 = vsel %vm358, 1, 0
        %v361 = vcvt.s32.f32 %v359
        %v362 = vcvt.s32.f32 %v360
        %v363 = vmax.f32 %v351, 0.0
        %v364 = vmax.f32 %v352, 0.0
        %v365 = vmul.f32 %v351, %v355
        %v366 = vmul.f32 %v352, %v356
        %v367 = vsub.f32 %v363, %v365
        %v368 = vsub.f32 %v364, %v366
        %v369 = vand.u32 2147483647, %v351
        %v370 = vand.u32 2147483647, %v352
        %v371 = vsub.f32 0.0, %v369
        %v372 = vsub.f32 0.0, %v370
        %v373 = vmul.f32 %v371, 1.442695
        %v374 = vpow.pop %v373
        %v375 = vmul.f32 %v372, 1.442695
        %v376 = vpow.pop %v375
        %v377 = vadd.f32 %v374, 1.0
        %v378 = vadd.f32 %v376, 1.0
        %v379 = vlog2.pop %v377
        %v380 = vmul.f32 %v379, 0.6931472
        %v381 = vlog2.pop %v378
        %v382 = vmul.f32 %v381, 0.6931472
        %v383 = vadd.f32 %v367, %v380
        %v384 = vadd.f32 %v368, %v382
        %v385 = vmul.f32 %v383, %v361
        %v386 = vmul.f32 %v384, %v362
        %v387 = vld [vmem:[%s260] sm:$0xff]
        %v388 = vadd.f32 %v385, %v386
        %v389 = vadd.f32 %v387, %v388
        %390 = vst [vmem:[%s260] sm:$0xff] %v389
        %v391 = vld [vmem:[%s264] sm:$0xff]
        %v392 = vadd.f32 %v361, %v362
        %v393 = vadd.f32 %v391, %v392
        %394 = vst [vmem:[%s264] sm:$0xff] %v393
      $region40: #{masked_bce_loss.1} parent=27 // pred_fallthru
        _
      %p395 = scmp.lt.s32.totalorder %s26, 1
      %s396 = scalar_select %p395, %s26, 1
      %s397 = smul.addr %s396, 8
      %s398 = scalar_lea.vmem %s3, %s397
      %p399 = scmp.lt.s32.totalorder %s26, 1
      %s400 = scalar_select %p399, %s26, 1
      %s401 = smul.addr %s400, 8
      %s402 = scalar_lea.vmem %s4, %s401
      // Predicated region
      $region41: #{masked_bce_loss.1} parent=27 // pred_check
        %p403 = pneg %p116
      $region42: #{masked_bce_loss.1} parent=27 // pred_check_branch
        %405 = sbr.rel (%p403) target = $region44
      $region43: #{masked_bce_loss.1} parent=27 // pred_region
        _
      $region44: #{masked_bce_loss.1} parent=27 // pred_fallthru
        _
      // Predicated region
      $region45: #{masked_bce_loss.1} parent=27 // pred_check
        %p406 = pneg %p142
      $region46: #{masked_bce_loss.1} parent=27 // pred_check_branch
        %408 = sbr.rel (%p406) target = $region48
      $region47: #{masked_bce_loss.1} parent=27 // pred_region
        _
      $region48: #{masked_bce_loss.1} parent=27 // pred_fallthru
        _
    $region28: #{masked_bce_loss.1} parent=5 // pred_fallthru
      _
    %p409 = scmp.le.s32.totalorder 2, %s17
    // Predicated region
    $region49: #{masked_bce_loss.1} parent=5 // pred_check
      %p410 = pneg %p409
    $region50: #{masked_bce_loss.1} parent=5 // pred_check_branch
      %412 = sbr.rel (%p410) target = $region52
    $region51: #{masked_bce_loss.1} parent=5 // pred_region
      %s413 = ssub.s32 %s17, 2
      // Predicated region
      $region53: #{masked_bce_loss.1} parent=51 // pred_check
        %p414 = pneg %p122
      $region54: #{masked_bce_loss.1} parent=51 // pred_check_branch
        %416 = sbr.rel (%p414) target = $region56
      $region55: #{masked_bce_loss.1} parent=51 // pred_region
        %p417 = scmp.lt.s32.totalorder %s28, 1
        %s418 = scalar_select %p417, %s28, 1
        %s419 = smul.addr %s418, 8
        %s420 = scalar_lea.vmem %s3, %s419
      $region56: #{masked_bce_loss.1} parent=51 // pred_fallthru
        _
      // Predicated region
      $region57: #{masked_bce_loss.1} parent=51 // pred_check
        %p421 = pneg %p148
      $region58: #{masked_bce_loss.1} parent=51 // pred_check_branch
        %423 = sbr.rel (%p421) target = $region60
      $region59: #{masked_bce_loss.1} parent=51 // pred_region
        %p424 = scmp.lt.s32.totalorder %s28, 1
        %s425 = scalar_select %p424, %s28, 1
        %s426 = smul.addr %s425, 8
        %s427 = scalar_lea.vmem %s4, %s426
      $region60: #{masked_bce_loss.1} parent=51 // pred_fallthru
        _
    $region52: #{masked_bce_loss.1} parent=5 // pred_fallthru
      _
  $region6: #{masked_bce_loss.1} parent=0 // loop_footer
    %s21 = sadd.s32 1, %s17
  $region7: #{masked_bce_loss.1} parent=0 // loop_footer_branch
    %16 = sbr.rel target = $region3
  $region8: #{masked_bce_loss.1} parent=0 // loop_exit
    _

</llo_original>
